<compile_context>
chip_gen: v7x
topology: tpu7x:2x2x1
jax: 0.10.0
libtpu: 0.0.40
codegen_flags: <defaults>
</compile_context>

<pallas_src>
import functools
import math

import numpy as np
import jax
import jax.numpy as jnp
from jax.experimental import pallas as pl
from jax.experimental.pallas import tpu as pltpu


# ----------------------------------------------------------------------------
# Kernels
# ----------------------------------------------------------------------------
def bn_stats_kernel(x_ref, o_ref, *, total_rows):
    # x_ref: (1, Cin, th, 2W) native dtype
    # o_ref: (Cin, 2) f32 accumulator: col 0 = sum(x), col 1 = sum(x*x)
    _, cin, th, w2 = x_ref.shape
    xb = x_ref[0].astype(jnp.float32)                      # (Cin, th, 2W)

    if total_rows % th != 0:
        # Partial last row tile: zero out the padded rows so they do not
        # contaminate the batch statistics.
        ti = pl.program_id(1)
        row = jax.lax.broadcasted_iota(jnp.int32, (cin, th, w2), 1)
        xb = jnp.where(ti * th + row < total_rows, xb, 0.0)

    s_lane = jnp.sum(xb, axis=2)                           # (Cin, th)
    s1 = jnp.sum(s_lane, axis=1, keepdims=True)            # (Cin, 1)
    sq_lane = jnp.sum(xb * xb, axis=2)                     # (Cin, th)
    s2 = jnp.sum(sq_lane, axis=1, keepdims=True)           # (Cin, 1)

    @pl.when((pl.program_id(0) == 0) & (pl.program_id(1) == 0))
    def _():
        o_ref[...] = jnp.zeros_like(o_ref)

    o_ref[...] += jnp.concatenate([s1, s2], axis=1)        # (Cin, 2)


def transition_kernel(x_ref, ss_ref, w_ref, pw_ref, o_ref):
    # x_ref:  (1, Cin, th, 2W)  native dtype; last axis = [even row | odd row]
    # ss_ref: (Cin, 2) f32      folded BN scale (col 0) and shift (col 1)
    # w_ref:  (Cout, Cin) bf16  1x1 conv weight with the 0.25 pool factor folded in
    # pw_ref: (W, Wo) bf16      column pair-sum matrix (entries 1.0)
    # o_ref:  (1, Cout, th*Wo)  flattened-spatial, lane-dense output block
    _, cin, th, w2 = x_ref.shape
    w = w2 // 2
    wo = pw_ref.shape[1]

    x = x_ref[0].astype(jnp.float32)                       # (Cin, th, 2W) f32 on VPU
    scale = ss_ref[:, 0:1].reshape(cin, 1, 1)              # (Cin, 1, 1)
    shift = ss_ref[:, 1:2].reshape(cin, 1, 1)

    # BatchNorm affine + ReLU (f32 on the VPU).
    z = jnp.maximum(x * scale + shift, 0.0)                # (Cin, th, 2W)

    # 2x2 avg pool, H direction: even-row half + odd-row half (contiguous
    # lane slices; if W % 128 != 0 the second slice is a cheap XLU rotate).
    zr = z[:, :, :w] + z[:, :, w:]                         # (Cin, th, W)

    # 2x2 avg pool, W direction: adjacent column pairs via a tiny bf16 matmul
    # (bf16-native MXU; f32 accumulation).
    zr2 = zr.reshape(cin * th, w).astype(jnp.bfloat16)     # lane-preserving merge
    zc = jnp.dot(zr2, pw_ref[...],
                 preferred_element_type=jnp.float32)       # (Cin*th, Wo) f32

    # Cast to bf16 BEFORE the sublane->lane relayout reshape (halves moved bytes),
    # giving channels-on-sublane / flattened-spatial-on-lane for the 1x1 conv.
    zp = zc.astype(jnp.bfloat16).reshape(cin, th * wo)     # (Cin, th*Wo) bf16

    # 1x1 conv on pooled pixels (MXU, bf16 operands, f32 accumulation).
    # Note: for tiny Cin/Cout (like the demo shapes) a VPU broadcast-MAC would
    # use less MXU padding; real transition layers (Cin/Cout in the hundreds)
    # want this MXU path.
    c = jnp.dot(w_ref[...], zp,
                preferred_element_type=jnp.float32)        # (Cout, th*Wo) f32

    o_ref[0] = c.astype(o_ref.dtype)


# ----------------------------------------------------------------------------
# Tiling helpers
# ----------------------------------------------------------------------------
def _lcm(a, b):
    return a * b // math.gcd(a, b)


def _cdiv(a, b):
    return -(-a // b)


def _pick_row_tile(ho, wo, row_bytes, n_batch, budget=8 * 1024 * 1024):
    """Output-row tile size.

    For th < ho every BlockSpec stays (8,128)-legal iff
        th % 8 == 0  and  (th * wo) % 128 == 0,
    whose smallest solution is step = lcm(8, 128 // gcd(128, wo)).
    The result always respects `budget` when a legal tiling exists, and when
    the batch alone cannot feed two TensorCores (n_batch < 2) it prefers at
    least two row tiles so the grid product is >= 2 (v7x megacore).
    """
    step = _lcm(8, 128 // math.gcd(128, wo))
    if step >= ho:
        return ho                      # cannot tile legally below the full extent
    max_tiles = _cdiv(ho, step)
    by_budget = max(1, budget // max(step * row_bytes, 1))
    n_steps = min(by_budget, max_tiles)
    if n_batch < 2:                    # keep >= 2 grid steps for 2-TC chips
        n_steps = min(n_steps, max(1, max_tiles // 2))
    return min(n_steps * step, ho)


# ----------------------------------------------------------------------------
# Forward wrapper
# ----------------------------------------------------------------------------
def transition_forward(x_nchw, gamma, beta, conv_w, eps=1e-5):
    """Pallas implementation of Transition.forward.  x_nchw: (N, Cin, H, W)."""
    n, cin, h, w = x_nchw.shape
    cout = conv_w.shape[0]
    assert h % 2 == 0 and w % 2 == 0, "avg_pool2d(2) requires even spatial dims"
    ho, wo = h // 2, w // 2

    in_bytes = jnp.dtype(x_nchw.dtype).itemsize
    out_dtype = x_nchw.dtype
    out_bytes = jnp.dtype(out_dtype).itemsize

    # Free row-major reshape in the NATIVE dtype (no f32 materialization):
    # each output row's two source rows become the two halves of the last axis.
    x_r = x_nchw.reshape(n, cin, ho, 2 * w)

    # Per-output-row resident bytes: double-buffered input + f32 intermediates
    # (z, zr), pooled temporaries, double-buffered output.
    row_bytes = (2 * cin * 2 * w * in_bytes      # x block (x2 pipeline buffers)
                 + cin * 2 * w * 4               # z (f32)
                 + cin * w * 4                   # zr (f32)
                 + cin * wo * (4 + 2)            # zc f32 + zp bf16
                 + cout * wo * 4                 # conv accumulator f32
                 + 2 * cout * wo * out_bytes)    # output block (x2 buffers)
    th = _pick_row_tile(ho, wo, row_bytes, n)
    n_tiles = _cdiv(ho, th)
    grid = (n, n_tiles)

    vmem_limit = 48 * 1024 * 1024                # <= v7x's 64 MiB; fine on v5e/v6e

    x_spec = pl.BlockSpec((1, cin, th, 2 * w), lambda ni, ti: (ni, 0, ti, 0))

    # Pass 1: per-channel sum and sum-of-squares in ONE fused pass over x
    # (training-mode BatchNorm batch statistics, biased variance).
    stats = pl.pallas_call(
        functools.partial(bn_stats_kernel, total_rows=ho),
        out_shape=jax.ShapeDtypeStruct((cin, 2), jnp.float32),
        grid_spec=pltpu.PrefetchScalarGridSpec(
            num_scalar_prefetch=0,
            grid=grid,
            in_specs=[x_spec],
            out_specs=pl.BlockSpec((cin, 2), lambda ni, ti: (0, 0)),
        ),
        compiler_params=pltpu.CompilerParams(
            dimension_semantics=("arbitrary", "arbitrary"),  # accumulator output
            vmem_limit_bytes=vmem_limit,
        ),
    )(x_r)

    cnt = jnp.float32(n * h * w)
    m1 = stats[:, 0] / cnt
    var = jnp.maximum(stats[:, 1] / cnt - m1 * m1, 0.0)     # guard cancellation
    scale = gamma.astype(jnp.float32) / jnp.sqrt(var + eps)
    shift = beta.astype(jnp.float32) - m1 * scale
    ss = jnp.stack([scale, shift], axis=1)                   # (Cin, 2), compact

    # 1x1 conv weight with the 0.25 average-pool factor folded in; bf16 MXU
    # operand (accumulation stays f32 inside the kernel).
    w_mat = (conv_w.reshape(cout, cin).astype(jnp.float32) * 0.25).astype(jnp.bfloat16)

    # Column pair-sum matrix (W, Wo), bf16 (entries exactly representable).
    pw_np = np.zeros((w, wo), dtype=np.float32)
    pw_np[np.arange(w), np.arange(w) // 2] = 1.0
    pw = jnp.asarray(pw_np, dtype=jnp.bfloat16)

    # Pass 2: fused BN -> ReLU -> 2x2 avg pool -> 1x1 conv.
    out_flat = pl.pallas_call(
        transition_kernel,
        out_shape=jax.ShapeDtypeStruct((n, cout, ho * wo), out_dtype),
        grid_spec=pltpu.PrefetchScalarGridSpec(
            num_scalar_prefetch=0,
            grid=grid,
            in_specs=[
                x_spec,
                pl.BlockSpec((cin, 2), lambda ni, ti: (0, 0)),
                pl.BlockSpec((cout, cin), lambda ni, ti: (0, 0)),
                pl.BlockSpec((w, wo), lambda ni, ti: (0, 0)),
            ],
            out_specs=pl.BlockSpec((1, cout, th * wo), lambda ni, ti: (ni, 0, ti)),
        ),
        compiler_params=pltpu.CompilerParams(
            dimension_semantics=("parallel", "parallel"),
            vmem_limit_bytes=vmem_limit,
        ),
    )(x_r, ss, w_mat, pw)

    # Free reshape back to NCHW.
    return out_flat.reshape(n, cout, ho, wo)


# ----------------------------------------------------------------------------
# Pure-JAX reference and test
# ----------------------------------------------------------------------------
def transition_reference(x_nchw, gamma, beta, conv_w, eps=1e-5):
    x = x_nchw.astype(jnp.float32)
    mean = jnp.mean(x, axis=(0, 2, 3))
    var = jnp.var(x, axis=(0, 2, 3))
    xn = (x - mean[None, :, None, None]) / jnp.sqrt(var[None, :, None, None] + eps)
    y = xn * gamma[None, :, None, None] + beta[None, :, None, None]
    y = jnp.maximum(y, 0.0)
    out = jnp.einsum("nchw,oc->nohw", y, conv_w.reshape(conv_w.shape[0], conv_w.shape[1]))
    n_, co, hh, ww = out.shape
    out = out.reshape(n_, co, hh // 2, 2, ww // 2, 2).mean(axis=(3, 5))
    return out


if __name__ == "__main__":
    # Small shapes consistent with the module: N=2, in_planes=4, H=W=16, out_planes=8.
    N, Cin, H, W = 2, 4, 16, 16
    Cout = 8

    key = jax.random.PRNGKey(0)
    kx, kg, kb, kw = jax.random.split(key, 4)
    x = jax.random.normal(kx, (N, Cin, H, W), dtype=jnp.float32)
    gamma = 1.0 + 0.1 * jax.random.normal(kg, (Cin,), dtype=jnp.float32)
    beta = 0.1 * jax.random.normal(kb, (Cin,), dtype=jnp.float32)
    conv_w = jax.random.normal(kw, (Cout, Cin, 1, 1), dtype=jnp.float32) * (1.0 / np.sqrt(Cin))

    out = transition_forward(x, gamma, beta, conv_w)
    out = jax.block_until_ready(out)

    ref = transition_reference(x, gamma, beta, conv_w)
    # Tolerance accounts for bf16 pool/conv matmul operands (f32 accumulation).
    np.testing.assert_allclose(np.asarray(out, dtype=np.float32), np.asarray(ref),
                               atol=2e-2, rtol=2e-2)
    assert out.shape == (N, Cout, H // 2, W // 2)

    print("KERNEL_OK")
</pallas_src>

<mosaic_0001>
module attributes {stable_mosaic.version = 11 : i64} {
  func.func @bn_stats_kernel(%arg0: i32, %arg1: i32, %arg2: memref<1x4x8x32xf32, #tpu.memory_space<vmem>>, %arg3: memref<4x2xf32, #tpu.memory_space<vmem>>) attributes {dimension_semantics = [#tpu.dimension_semantics<arbitrary>, #tpu.dimension_semantics<arbitrary>], iteration_bounds = array<i64: 2, 1>, scalar_prefetch = 0 : i64, scratch_operands = 0 : i64, tpu.core_type = #tpu.core_type<tc>, window_params = [{transform_indices = @transform_0, window_bounds = array<i64: 1, 4, 8, 32>}, {pipeline_mode = #tpu.pipeline_mode<synchronous>, transform_indices = @transform_1, window_bounds = array<i64: 4, 2>}]} {
    %c0 = arith.constant 0 : index
    %c0_0 = arith.constant 0 : index
    %c0_1 = arith.constant 0 : index
    %c0_2 = arith.constant 0 : index
    %0 = vector.load %arg2[%c0, %c0_0, %c0_1, %c0_2] : memref<1x4x8x32xf32, #tpu.memory_space<vmem>>, vector<1x4x8x32xf32>
    %1 = vector.shape_cast %0 : vector<1x4x8x32xf32> to vector<4x8x32xf32>
    %cst = arith.constant dense<0.000000e+00> : vector<4x8xf32>
    %2 = vector.multi_reduction <add>, %1, %cst [2] : vector<4x8x32xf32> to vector<4x8xf32>
    %cst_3 = arith.constant dense<0.000000e+00> : vector<4xf32>
    %3 = vector.multi_reduction <add>, %2, %cst_3 [1] : vector<4x8xf32> to vector<4xf32>
    %4 = vector.shape_cast %3 : vector<4xf32> to vector<4x1xf32>
    %5 = arith.mulf %1, %1 : vector<4x8x32xf32>
    %cst_4 = arith.constant dense<0.000000e+00> : vector<4x8xf32>
    %6 = vector.multi_reduction <add>, %5, %cst_4 [2] : vector<4x8x32xf32> to vector<4x8xf32>
    %cst_5 = arith.constant dense<0.000000e+00> : vector<4xf32>
    %7 = vector.multi_reduction <add>, %6, %cst_5 [1] : vector<4x8xf32> to vector<4xf32>
    %8 = vector.shape_cast %7 : vector<4xf32> to vector<4x1xf32>
    %c0_i32 = arith.constant 0 : i32
    %9 = arith.cmpi eq, %arg0, %c0_i32 : i32
    %c0_i32_6 = arith.constant 0 : i32
    %10 = arith.cmpi eq, %arg1, %c0_i32_6 : i32
    %11 = arith.andi %9, %10 : i1
    %12 = arith.extui %11 : i1 to i32
    %c0_i32_7 = arith.constant 0 : i32
    %13 = arith.cmpi ne, %12, %c0_i32_7 : i32
    scf.if %13 {
      %cst_12 = arith.constant 0.000000e+00 : f32
      %18 = vector.broadcast %cst_12 : f32 to vector<4x2xf32>
      %c0_13 = arith.constant 0 : index
      %c0_14 = arith.constant 0 : index
      %19 = vector.load %arg3[%c0_13, %c0_14] : memref<4x2xf32, #tpu.memory_space<vmem>>, vector<4x2xf32>
      tpu.vector_store %arg3[%c0_13, %c0_14], %18 {strides = array<i32>} : memref<4x2xf32, #tpu.memory_space<vmem>>, vector<4x2xf32>,
    } else {
    }
    %c0_8 = arith.constant 0 : index
    %c0_9 = arith.constant 0 : index
    %14 = vector.load %arg3[%c0_8, %c0_9] : memref<4x2xf32, #tpu.memory_space<vmem>>, vector<4x2xf32>
    %15 = tpu.concatenate %4, %8 in 1 : vector<4x1xf32>, vector<4x1xf32> -> vector<4x2xf32>
    %16 = arith.addf %14, %15 : vector<4x2xf32>
    %c0_10 = arith.constant 0 : index
    %c0_11 = arith.constant 0 : index
    %17 = vector.load %arg3[%c0_10, %c0_11] : memref<4x2xf32, #tpu.memory_space<vmem>>, vector<4x2xf32>
    tpu.vector_store %arg3[%c0_10, %c0_11], %16 {strides = array<i32>} : memref<4x2xf32, #tpu.memory_space<vmem>>, vector<4x2xf32>,
    return
  }
  func.func @transform_0(%arg0: i32, %arg1: i32) -> (i32, i32, i32, i32) {
    %c0_i32 = arith.constant 0 : i32
    %c0_i32_0 = arith.constant 0 : i32
    %c0_i32_1 = arith.constant 0 : i32
    return %arg0, %c0_i32, %arg1, %c0_i32_0 : i32, i32, i32, i32
  }
  func.func @transform_1(%arg0: i32, %arg1: i32) -> (i32, i32) {
    %c0_i32 = arith.constant 0 : i32
    %c0_i32_0 = arith.constant 0 : i32
    %c0_i32_1 = arith.constant 0 : i32
    return %c0_i32, %c0_i32_0 : i32, i32
  }
}

</mosaic_0001>

<llo_original>
// kernel: tpu_custom_call.1
$region0: #{tpu_custom_call.1}
  #allocation0 [shape = 'u32[]', space=smem, size = 0x4, offset = 0x4, fixed_abs, tag = 'smem constant byte address 0x4 - core index']
  #allocation1 [shape = 'u32[144,128]{1,0:T(1,128)}', space=vmem, size = 0x12000, scoped, tag = 'internal scratch']
  %s0 = inlined_call_operand.hbm [shape: f32[2,4,8,32], index: 0, kind: input, shape index: {}]
  %s1 = inlined_call_operand.vmem [shape: f32[4,2], index: 1, kind: output, shape index: {}]
  %s2 = sld [smem:[#allocation0]]
  $region45: #{tpu_custom_call.1} parent=0
    _
  %s4 = ssub.s32 1, %s2
  %s5 = scalar_select 0, %s4, %s2
  $region1: #{tpu_custom_call.1} parent=0
    #allocation2 [shape = 'u8[32768]{0}', space=vmem, size = 0x8000, scoped, tag = 'input window, operand 0']
    #allocation3 [shape = 's32[2]{0}', space=sflag, size = 0x8, scoped, tag = 'scoped memory for tpu_custom_call.1']
    %6 = vsyncpa [#allocation3], 0
    %s7 = scalar_lea.sflag [#allocation3], 1
    %8 = vsyncpa %s7, 0
    loop: start=0, step=1, limit=4
    $region2: #{tpu_custom_call.1} parent=1 // loop_pre_header
      _
    $region3: #{tpu_custom_call.1} parent=1 // loop_header
      %s10 = sphi 0, %s14
      %p11 = scmp.ge.s32.totalorder %s10, 4
      %s17 = sphi 0, %s29
      %s18 = sphi 0, %s25
      %s19 = sphi 0, %s17
      %s20 = sphi 0, %s18
      %s21 = sphi 0, %s19
      %s22 = sphi 0, %s20
      %s34 = sphi 0, %s36
      %s37 = sphi 0, %s34
      %s38 = sphi 0, %s37
      %s54 = sphi 0, %s38
      %s58 = sphi 0, %s58
      %s60 = sphi 0, %s58
      %s61 = sphi 0, %s60
      %s75 = sphi 0, %s61
    $region4: #{tpu_custom_call.1} parent=1 // loop_header_branch
      %13 = sbr.rel (%p11) target = $region8
    $region5: #{tpu_custom_call.1} parent=1 // loop_body
      %s15 = ssub.s32 %s10, 1
      %s16 = ssub.s32 %s10, 2
      %s23 = sadd.s32 1, %s18
      %p24 = scmp.ge.s32.totalorder %s23, 1
      %s25 = scalar_select %p24, 0, %s23
      %s26 = sadd.s32 1, %s17
      %s27 = scalar_select %p24, %s26, %s17
      %p28 = scmp.ge.s32.totalorder %s27, 2
      %s29 = scalar_select %p28, 0, %s27
      %s30 = ssub.s32 %s17, %s29
      %s31 = ssub.s32 %s18, %s25
      %s32 = sor.u32 %s30, %s31
      %p33 = scmp.eq.s32.totalorder %s32, 0
      %s35 = sadd.s32 %s34, 1
      %s36 = scalar_select %p33, %s34, %s35
      %p39 = pneg %p33
      %p40 = scmp.eq.s32.totalorder %s10, 1
      %p41 = por %p39, %p40
      %p42 = scmp.ne.s32.totalorder %s34, %s37
      %p43 = scmp.eq.s32.totalorder %s10, 0
      %p44 = por %p42, %p43
      %p45 = scmp.ne.s32.totalorder %s34, %s37
      %p46 = scmp.eq.s32.totalorder %s15, 1
      %p47 = por %p45, %p46
      %p48 = scmp.ne.s32.totalorder %s37, %s38
      %p49 = scmp.eq.s32.totalorder %s15, 0
      %p50 = por %p48, %p49
      %p51 = scmp.ne.s32.totalorder %s37, %s38
      %p52 = scmp.eq.s32.totalorder %s16, 1
      %p53 = por %p51, %p52
      %p55 = scmp.ne.s32.totalorder %s38, %s54
      %p56 = scmp.eq.s32.totalorder %s16, 0
      %p57 = por %p55, %p56
      %s59 = sadd.s32 %s58, 1
      %p62 = scmp.eq.s32.totalorder %s10, 1
      %p63 = scmp.ne.s32.totalorder %s58, %s60
      %p64 = scmp.eq.s32.totalorder %s10, 0
      %p65 = por %p63, %p64
      %p66 = scmp.ne.s32.totalorder %s58, %s60
      %p67 = scmp.eq.s32.totalorder %s15, 1
      %p68 = por %p66, %p67
      %p69 = scmp.ne.s32.totalorder %s60, %s61
      %p70 = scmp.eq.s32.totalorder %s15, 0
      %p71 = por %p69, %p70
      %p72 = scmp.ne.s32.totalorder %s60, %s61
      %p73 = scmp.eq.s32.totalorder %s16, 1
      %p74 = por %p72, %p73
      %p76 = scmp.ne.s32.totalorder %s61, %s75
      %p77 = scmp.eq.s32.totalorder %s16, 0
      %p78 = por %p76, %p77
      %p79 = scmp.le.s32.totalorder 1, %s10
      %p80 = scmp.lt.s32.totalorder %s10, 3
      %p81 = pnand %p79, %p80
      %p82 = pneg %p81
      // Predicated region
      $region9: #{tpu_custom_call.1} parent=5 // pred_check
        _
      $region10: #{tpu_custom_call.1} parent=5 // pred_check_branch
        %84 = sbr.rel (%p81) target = $region12
      $region11: #{tpu_custom_call.1} parent=5 // pred_region
        %s85 = ssub.s32 %s10, 1
      $region12: #{tpu_custom_call.1} parent=5 // pred_fallthru
        _
      %p86 = scmp.lt.s32.totalorder %s10, 2
      // Predicated region
      $region13: #{tpu_custom_call.1} parent=5 // pred_check
        %p87 = pneg %p86
      $region14: #{tpu_custom_call.1} parent=5 // pred_check_branch
        %89 = sbr.rel (%p87) target = $region16
      $region15: #{tpu_custom_call.1} parent=5 // pred_region
        // Predicated region
        $region17: #{tpu_custom_call.1} parent=15 // pred_check
          %p90 = pneg %p44
        $region18: #{tpu_custom_call.1} parent=15 // pred_check_branch
          %92 = sbr.rel (%p90) target = $region20
        $region19: #{tpu_custom_call.1} parent=15 // pred_region
          %s93 = sand.u32 %s34, 1
          %s94 = scalar_lea.sflag [#allocation3], %s93
          %s95 = sand.u32 %s34, 1
          %s96 = smul.addr %s95, 32
          %s97 = scalar_lea.vmem [#allocation2], %s96
          %s99 = ssub.s32 512, 512
          %100 = vsyncadd %s94, %s99
          %s101 = smul.addr %s17, 4
          %s102 = sadd.s32 %s18, %s101
          %s103 = smul.addr %s102, 128
          %s104 = scalar_lea.hbm %s0, %s103
          %s105 = sshll.u32 %s97, 4
          %s106 = int_to_ptr.vmem [resolvable:$true] %s105
          %111 = dma.hbm_to_vmem [thread:$0]  %s104, 512, %s106, %s94, 128, 128, 8
        $region20: #{tpu_custom_call.1} parent=15 // pred_fallthru
          _
      $region16: #{tpu_custom_call.1} parent=5 // pred_fallthru
        _
      %p112 = scmp.le.s32.totalorder 1, %s10
      %p113 = scmp.lt.s32.totalorder %s10, 3
      %p114 = pnand %p112, %p113
      %p115 = pneg %p114
      // Predicated region
      $region21: #{tpu_custom_call.1} parent=5 // pred_check
        _
      $region22: #{tpu_custom_call.1} parent=5 // pred_check_branch
        %117 = sbr.rel (%p114) target = $region24
      $region23: #{tpu_custom_call.1} parent=5 // pred_region
        %s118 = ssub.s32 %s10, 1
        %s119 = sand.u32 %s37, 1
        %s120 = scalar_lea.sflag [#allocation3], %s119
        %s121 = sand.u32 %s37, 1
        %s122 = smul.addr %s121, 32
        %s123 = scalar_lea.vmem [#allocation2], %s122
        // Predicated region
        $region25: #{tpu_custom_call.1} parent=23 // pred_check
          %p124 = pneg %p50
        $region26: #{tpu_custom_call.1} parent=23 // pred_check_branch
          %126 = sbr.rel (%p124) target = $region28
        $region27: #{tpu_custom_call.1} parent=23 // pred_region
          %127 = dma.done %s120, 512
        $region28: #{tpu_custom_call.1} parent=23 // pred_fallthru
          _
        %s128 = sand.u32 %s37, 1
        %s129 = scalar_lea.sflag [#allocation3], %s128
        %s130 = sand.u32 %s37, 1
        %s131 = smul.addr %s130, 32
        %s132 = scalar_lea.vmem [#allocation2], %s131
        %p133 = pneg %p50
        %p134 = pneg %p47
        %p135 = pneg %p71
        %p136 = pneg %p68
        %v137 = vld [vmem:[%s123] sm:$0xff]
        %v138 = vld [vmem:[%s123 + $0x8] sm:$0xff]
        %v139 = vld [vmem:[%s123 + $0x10] sm:$0xff]
        %v140 = vld [vmem:[%s123 + $0x18] sm:$0xff]
        %vm141 = vcmask 261120
        %v142 = vsel %vm141, %v137, 0.0
        %143 = vadd.xlane.f32.xlu0 %v142
        %v144 = vpop.xlane.xlu0 %143
        %v145 = vsel %vm141, %v138, 0.0
        %146 = vadd.xlane.f32.xlu0 %v145
        %v147 = vpop.xlane.xlu0 %146
        %v148 = vsel %vm141, %v139, 0.0
        %149 = vadd.xlane.f32.xlu0 %v148
        %v150 = vpop.xlane.xlu0 %149
        %v151 = vsel %vm141, %v140, 0.0
        %152 = vadd.xlane.f32.xlu0 %v151
        %v153 = vpop.xlane.xlu0 %152
        %v158 = vlaneseq
        %v159 = vand.u32 %v158, 127
        %v160 = vlaneseq
        %v161 = vshrl.u32 %v160, 7
        %v162 = vsub.s32 %v159, %v161
        %v163 = vrot.slane %v144, %v162
        %v164 = vlaneseq
        %v165 = vshrl.u32 %v164, 7
        %v166 = vsub.s32 %v159, %v165
        %v167 = vrot.slane %v147, %v166
        %v168 = vlaneseq
        %v169 = vshrl.u32 %v168, 7
        %v170 = vsub.s32 %v159, %v169
        %v171 = vrot.slane %v150, %v170
        %v172 = vlaneseq
        %v173 = vshrl.u32 %v172, 7
        %v174 = vsub.s32 %v159, %v173
        %v175 = vrot.slane %v153, %v174
        %vm176 = vcmask 1041409
        %v177 = vsel %vm176, %v167, %v163
        %vm178 = vcmask 1042434
        %v179 = vsel %vm178, %v171, %v177
        %vm180 = vcmask 1043459
        %v181 = vsel %vm180, %v175, %v179
        %vm183 = vcmask 60416
        %v184 = vsel %vm183, %v181, 0.0
        %185 = vadd.xlane.f32.xlu0 %v184
        %v186 = vpop.xlane.xlu0 %185
        %v187 = vmul.f32 %v137, %v137
        %v188 = vmul.f32 %v138, %v138
        %v189 = vmul.f32 %v139, %v139
        %v190 = vmul.f32 %v140, %v140
        %v191 = vsel %vm141, %v187, 0.0
        %192 = vadd.xlane.f32.xlu0 %v191
        %v193 = vpop.xlane.xlu0 %192
        %v194 = vsel %vm141, %v188, 0.0
        %195 = vadd.xlane.f32.xlu0 %v194
        %v196 = vpop.xlane.xlu0 %195
        %v197 = vsel %vm141, %v189, 0.0
        %198 = vadd.xlane.f32.xlu0 %v197
        %v199 = vpop.xlane.xlu0 %198
        %v200 = vsel %vm141, %v190, 0.0
        %201 = vadd.xlane.f32.xlu0 %v200
        %v202 = vpop.xlane.xlu0 %201
        %v207 = vlaneseq
        %v208 = vshrl.u32 %v207, 7
        %v209 = vsub.s32 %v159, %v208
        %v210 = vrot.slane %v193, %v209
        %v211 = vlaneseq
        %v212 = vshrl.u32 %v211, 7
        %v213 = vsub.s32 %v159, %v212
        %v214 = vrot.slane %v196, %v213
        %v215 = vlaneseq
        %v216 = vshrl.u32 %v215, 7
        %v217 = vsub.s32 %v159, %v216
        %v218 = vrot.slane %v199, %v217
        %v219 = vlaneseq
        %v220 = vshrl.u32 %v219, 7
        %v221 = vsub.s32 %v159, %v220
        %v222 = vrot.slane %v202, %v221
        %v223 = vsel %vm176, %v214, %v210
        %v224 = vsel %vm178, %v218, %v223
        %v225 = vsel %vm180, %v222, %v224
        %v227 = vsel %vm183, %v225, 0.0
        %228 = vadd.xlane.f32.xlu0 %v227
        %v229 = vpop.xlane.xlu0 %228
        %p230 = scmp.eq.s32.totalorder %s19, 0
        %p231 = scmp.eq.s32.totalorder %s20, 0
        %p232 = pnand %p230, %p231
        %p233 = pneg %p232
        // Predicated region
        $region29: #{tpu_custom_call.1} parent=23 // pred_check
          _
        $region30: #{tpu_custom_call.1} parent=23 // pred_check_branch
          %235 = sbr.rel (%p232) target = $region32
        $region31: #{tpu_custom_call.1} parent=23 // pred_region
          %vm236 = vcmask 11264
          %237 = vst.msk [vmem:[%s1] sm:$0xf] %vm236, 0.0
        $region32: #{tpu_custom_call.1} parent=23 // pred_fallthru
          _
        %v238 = vld [vmem:[%s1] sm:$0xf]
        %vm239 = vcmask 7168
        %v240 = vsel %vm239, %v186, %v229
        %v241 = vadd.f32 %v238, %v240
        %vm242 = vcmask 11264
        %243 = vst.msk [vmem:[%s1] sm:$0xf] %vm242, %v241
        // Predicated region
        $region33: #{tpu_custom_call.1} parent=23 // pred_check
          %p244 = pneg %p68
        $region34: #{tpu_custom_call.1} parent=23 // pred_check_branch
          %246 = sbr.rel (%p244) target = $region36
        $region35: #{tpu_custom_call.1} parent=23 // pred_region
          _
        $region36: #{tpu_custom_call.1} parent=23 // pred_fallthru
          _
        // Predicated region
        $region37: #{tpu_custom_call.1} parent=23 // pred_check
          %p247 = pneg %p68
        $region38: #{tpu_custom_call.1} parent=23 // pred_check_branch
          %249 = sbr.rel (%p247) target = $region40
        $region39: #{tpu_custom_call.1} parent=23 // pred_region
          _
        $region40: #{tpu_custom_call.1} parent=23 // pred_fallthru
          _
      $region24: #{tpu_custom_call.1} parent=5 // pred_fallthru
        _
      %p250 = scmp.le.s32.totalorder 2, %s10
      // Predicated region
      $region41: #{tpu_custom_call.1} parent=5 // pred_check
        %p251 = pneg %p250
      $region42: #{tpu_custom_call.1} parent=5 // pred_check_branch
        %253 = sbr.rel (%p251) target = $region44
      $region43: #{tpu_custom_call.1} parent=5 // pred_region
        %s254 = ssub.s32 %s10, 2
      $region44: #{tpu_custom_call.1} parent=5 // pred_fallthru
        _
    $region6: #{tpu_custom_call.1} parent=1 // loop_footer
      %s14 = sadd.s32 1, %s10
    $region7: #{tpu_custom_call.1} parent=1 // loop_footer_branch
      %9 = sbr.rel target = $region3
    $region8: #{tpu_custom_call.1} parent=1 // loop_exit
      _
    %255 = vsyncpa [#allocation3], 1
    %s256 = scalar_lea.sflag [#allocation3], 1
    %257 = vsyncpa %s256, 1

</llo_original>
